<compile_context>
chip_gen: v6e
topology: v6e:2x2x1
jax: 0.10.0
libtpu: 0.0.40
codegen_flags: <defaults>
</compile_context>

<pallas_src>
import jax
import jax.numpy as jnp
import numpy as np
from jax.experimental import pallas as pl
from jax.experimental.pallas import tpu as pltpu


def _fft_mlp_kernel(x_ref, w_ref, b_ref, o_ref):
    # x_ref: (B, tn, S) rows of one channel; w_ref: (S, So); b_ref: (1, So)
    B, tn, S = x_ref.shape
    So = w_ref.shape[-1]
    rows = x_ref[...].reshape(B * tn, S)          # leading-dim merge (free)
    y = jnp.dot(rows, w_ref[...], preferred_element_type=jnp.float32) + b_ref[...]
    o_ref[...] = y.reshape(B, tn, So).astype(o_ref.dtype)


def fold_fft_params(params, s_in):
    """One-time fold of the rfft DFT basis into the per-channel linears.

    Done in float64 on the host for accuracy (explicit length-S dot instead of
    an FFT), then cast to f32.  Call once; reuse w_eff/b_eff across calls.
    """
    wr = np.asarray(params["wr"], dtype=np.float64)   # (C, F, So)
    wi = np.asarray(params["wi"], dtype=np.float64)   # (C, F, So)
    br = np.asarray(params["br"], dtype=np.float64)   # (C, So)
    bi = np.asarray(params["bi"], dtype=np.float64)   # (C, So)
    C, F, So = wr.shape

    # rfft (norm='backward'): X[k] = sum_n x[n] * exp(-2*pi*i*n*k/S)
    n = np.arange(s_in)[:, None]
    k = np.arange(F)[None, :]
    ang = 2.0 * np.pi * n * k / s_in
    dft_cos = np.cos(ang)            # (S, F) -> real part
    dft_msin = -np.sin(ang)          # (S, F) -> imag part

    w_eff = (np.einsum('sf,cfo->cso', dft_cos, wr)
             + np.einsum('sf,cfo->cso', dft_msin, wi))       # (C, S, So)
    b_eff = (br + bi).reshape(C, 1, So)                       # (C, 1, So)
    return (jnp.asarray(w_eff, dtype=jnp.float32),
            jnp.asarray(b_eff, dtype=jnp.float32))


def _pick_row_tile(B, N, S, So, budget_bytes=28 * 1024 * 1024):
    """Largest row tile (divisor of N, multiple of 8 when possible) whose
    double-buffered VMEM footprint stays under `budget_bytes`."""
    def footprint(tn):
        blocks = 2 * B * tn * (S + So)      # double-buffered x + out tiles
        weights = 2 * (S * So + So)         # resident weight + bias (x2 margin)
        return 4 * (blocks + weights)       # f32 bytes

    cands = [N] + [t for t in range(8, N, 8) if N % t == 0]
    cands = sorted(set(cands), reverse=True)
    for t in cands:
        if footprint(t) <= budget_bytes:
            return t
    return cands[-1]


def fft_mlp_pallas(x, w_eff, b_eff):
    """x: [B, C, N, S] float32; w_eff: [C, S, So]; b_eff: [C, 1, So].
    Returns [B, C, N, So] float32 (== fft_mlp.forward)."""
    B, C, N, S = x.shape
    So = w_eff.shape[-1]
    x = x.astype(jnp.float32)

    tn = _pick_row_tile(B, N, S, So)
    grid = (C, N // tn)   # channel OUTER -> w_eff[c]/b_eff[c] stay VMEM-resident

    flops = 2 * B * C * N * S * So
    bytes_accessed = 4 * (B * C * N * S + B * C * N * So + C * S * So + C * So)

    return pl.pallas_call(
        _fft_mlp_kernel,
        out_shape=jax.ShapeDtypeStruct((B, C, N, So), jnp.float32),
        grid=grid,
        in_specs=[
            # x rows of channel c, native layout -> no wrapper transpose
            pl.BlockSpec((B, None, tn, S), lambda c, r: (0, c, r, 0)),
            # fused weight / bias: resident across the row axis
            pl.BlockSpec((None, S, So), lambda c, r: (c, 0, 0)),
            pl.BlockSpec((None, 1, So), lambda c, r: (c, 0, 0)),
        ],
        out_specs=pl.BlockSpec((B, None, tn, So), lambda c, r: (0, c, r, 0)),
        compiler_params=pltpu.CompilerParams(
            dimension_semantics=("parallel", "parallel"),
            vmem_limit_bytes=48 * 1024 * 1024),
        cost_estimate=pl.CostEstimate(
            flops=flops, transcendentals=0, bytes_accessed=bytes_accessed),
    )(x, w_eff, b_eff)


def _reference(x, params):
    """Pure-JAX reference of the PyTorch fft_mlp forward."""
    xf = jnp.fft.rfft(x, axis=-1)
    return (jnp.einsum('bcnf,cfo->bcno', jnp.real(xf), params["wr"])
            + params["br"][None, :, None, :]
            + jnp.einsum('bcnf,cfo->bcno', jnp.imag(xf), params["wi"])
            + params["bi"][None, :, None, :])


if __name__ == "__main__":
    # small shapes: batch=2, channels=4, tokens=16, seq_in=16, seq_out=32
    B, C, N, S_in, S_out = 2, 4, 16, 16, 32
    F = S_in // 2 + 1

    key = jax.random.PRNGKey(0)
    kx, k1, k2, k3, k4 = jax.random.split(key, 5)

    x = jax.random.normal(kx, (B, C, N, S_in), dtype=jnp.float32)

    # deterministic synthetic parameters (xavier-ish scaling, torch dims squeezed)
    params = {
        "wr": jax.random.uniform(k1, (C, F, S_out), jnp.float32, -1, 1) * np.sqrt(6.0 / (F + S_out)),
        "wi": jax.random.uniform(k2, (C, F, S_out), jnp.float32, -1, 1) * np.sqrt(6.0 / (F + S_out)),
        "br": jax.random.uniform(k3, (C, S_out), jnp.float32, -1, 1) * np.sqrt(6.0 / (1 + S_out)),
        "bi": jax.random.uniform(k4, (C, S_out), jnp.float32, -1, 1) * np.sqrt(6.0 / (1 + S_out)),
    }

    # One-time parameter fold (outside the per-call path).
    w_eff, b_eff = fold_fft_params(params, S_in)

    out = jax.block_until_ready(fft_mlp_pallas(x, w_eff, b_eff))
    ref = _reference(x, params)
    np.testing.assert_allclose(np.asarray(out), np.asarray(ref), rtol=1e-4, atol=1e-5)

    print("KERNEL_OK")
</pallas_src>

<mosaic_0001>
module attributes {stable_mosaic.version = 11 : i64} {
  func.func @_fft_mlp_kernel(%arg0: i32, %arg1: i32, %arg2: memref<2x1x16x16xf32, #tpu.memory_space<vmem>>, %arg3: memref<1x16x32xf32, #tpu.memory_space<vmem>>, %arg4: memref<1x1x32xf32, #tpu.memory_space<vmem>>, %arg5: memref<2x1x16x32xf32, #tpu.memory_space<vmem>>) attributes {dimension_semantics = [#tpu.dimension_semantics<parallel>, #tpu.dimension_semantics<parallel>], iteration_bounds = array<i64: 4, 1>, scalar_prefetch = 0 : i64, scratch_operands = 0 : i64, tpu.core_type = #tpu.core_type<tc>, window_params = [{transform_indices = @transform_0, window_bounds = array<i64: 2, 1, 16, 16>}, {transform_indices = @transform_1, window_bounds = array<i64: 1, 16, 32>}, {transform_indices = @transform_2, window_bounds = array<i64: 1, 1, 32>}, {transform_indices = @transform_3, window_bounds = array<i64: 2, 1, 16, 32>}]} {
    %c0 = arith.constant 0 : index
    %c0_0 = arith.constant 0 : index
    %c0_1 = arith.constant 0 : index
    %c0_2 = arith.constant 0 : index
    %0 = vector.load %arg2[%c0, %c0_0, %c0_1, %c0_2] : memref<2x1x16x16xf32, #tpu.memory_space<vmem>>, vector<2x1x16x16xf32>
    %1 = vector.shape_cast %0 : vector<2x1x16x16xf32> to vector<2x16x16xf32>
    %2 = vector.shape_cast %1 : vector<2x16x16xf32> to vector<32x16xf32>
    %c0_3 = arith.constant 0 : index
    %c0_4 = arith.constant 0 : index
    %c0_5 = arith.constant 0 : index
    %3 = vector.load %arg3[%c0_3, %c0_4, %c0_5] : memref<1x16x32xf32, #tpu.memory_space<vmem>>, vector<1x16x32xf32>
    %4 = vector.shape_cast %3 : vector<1x16x32xf32> to vector<16x32xf32>
    %cst = arith.constant dense<0.000000e+00> : vector<32x32xf32>
    %5 = tpu.matmul %2, %4, %cst {dimension_numbers = #tpu.dot_dimension_numbers<[1], [0], [0], [1], [0, 0, 1, 1], [], []>} : vector<32x16xf32>, vector<16x32xf32>, vector<32x32xf32> -> vector<32x32xf32>
    %c0_6 = arith.constant 0 : index
    %c0_7 = arith.constant 0 : index
    %c0_8 = arith.constant 0 : index
    %6 = vector.load %arg4[%c0_6, %c0_7, %c0_8] : memref<1x1x32xf32, #tpu.memory_space<vmem>>, vector<1x1x32xf32>
    %7 = vector.shape_cast %6 : vector<1x1x32xf32> to vector<1x32xf32>
    %8 = vector.broadcast %7 : vector<1x32xf32> to vector<32x32xf32>
    %9 = arith.addf %5, %8 : vector<32x32xf32>
    %10 = vector.shape_cast %9 : vector<32x32xf32> to vector<2x16x32xf32>
    %c0_9 = arith.constant 0 : index
    %c0_10 = arith.constant 0 : index
    %c0_11 = arith.constant 0 : index
    %c0_12 = arith.constant 0 : index
    %11 = vector.load %arg5[%c0_9, %c0_10, %c0_11, %c0_12] : memref<2x1x16x32xf32, #tpu.memory_space<vmem>>, vector<2x1x16x32xf32>
    %12 = vector.shape_cast %11 : vector<2x1x16x32xf32> to vector<2x16x32xf32>
    %13 = vector.shape_cast %10 : vector<2x16x32xf32> to vector<2x1x16x32xf32>
    tpu.vector_store %arg5[%c0_9, %c0_10, %c0_11, %c0_12], %13 {strides = array<i32>} : memref<2x1x16x32xf32, #tpu.memory_space<vmem>>, vector<2x1x16x32xf32>,
    return
  }
  func.func @transform_0(%arg0: i32, %arg1: i32) -> (i32, i32, i32, i32) {
    %c0_i32 = arith.constant 0 : i32
    %c0_i32_0 = arith.constant 0 : i32
    %c0_i32_1 = arith.constant 0 : i32
    return %c0_i32, %arg0, %arg1, %c0_i32_0 : i32, i32, i32, i32
  }
  func.func @transform_1(%arg0: i32, %arg1: i32) -> (i32, i32, i32) {
    %c0_i32 = arith.constant 0 : i32
    %c0_i32_0 = arith.constant 0 : i32
    %c0_i32_1 = arith.constant 0 : i32
    return %arg0, %c0_i32, %c0_i32_0 : i32, i32, i32
  }
  func.func @transform_2(%arg0: i32, %arg1: i32) -> (i32, i32, i32) {
    %c0_i32 = arith.constant 0 : i32
    %c0_i32_0 = arith.constant 0 : i32
    %c0_i32_1 = arith.constant 0 : i32
    return %arg0, %c0_i32, %c0_i32_0 : i32, i32, i32
  }
  func.func @transform_3(%arg0: i32, %arg1: i32) -> (i32, i32, i32, i32) {
    %c0_i32 = arith.constant 0 : i32
    %c0_i32_0 = arith.constant 0 : i32
    %c0_i32_1 = arith.constant 0 : i32
    return %c0_i32, %arg0, %arg1, %c0_i32_0 : i32, i32, i32, i32
  }
}

</mosaic_0001>

<llo_original>
// kernel: tpu_custom_call.1
$region0: #{tpu_custom_call.1}
  #allocation0 [shape = 'u32[]', space=smem, size = 0x4, offset = 0x4, fixed_abs, tag = 'smem constant byte address 0x4 - core index']
  #allocation1 [shape = 'u32[144,128]{1,0:T(1,128)}', space=vmem, size = 0x12000, scoped, tag = 'internal scratch']
  #allocation9 [shape = 's32[]', space=sflag, size = 0x4, offset = 0, fixed_abs, tag = 'sflag constant byte address 0x0 - dummy sync flag']
  #allocation11 [shape = 's32[]', space=sflag, size = 0x4, offset = 0, fixed_abs, tag = 'sflag constant byte address 0x0 - dummy sync flag']
  %s0 = inlined_call_operand.hbm [shape: f32[2,4,16,16], index: 0, kind: input, shape index: {}]
  %s1 = inlined_call_operand.hbm [shape: f32[4,16,32], index: 1, kind: input, shape index: {}]
  %s2 = inlined_call_operand.hbm [shape: f32[4,1,32], index: 2, kind: input, shape index: {}]
  %s3 = inlined_call_operand.hbm [shape: f32[2,4,16,32], index: 3, kind: output, shape index: {}]
  %s4 = sld [smem:[#allocation0]]
  $region57: #{tpu_custom_call.1} parent=0
    _
  %s6 = ssub.s32 1, %s4
  %s7 = scalar_select 0, %s6, %s4
  $region1: #{tpu_custom_call.1} parent=0
    #allocation2 [shape = 'u8[32768]{0}', space=vmem, size = 0x8000, scoped, tag = 'input window, operand 0']
    #allocation3 [shape = 's32[2]{0}', space=sflag, size = 0x8, scoped, tag = 'scoped memory for tpu_custom_call.1']
    #allocation4 [shape = 's32[2]{0}', space=sflag, size = 0x8, scoped, tag = 'scoped memory for tpu_custom_call.1']
    #allocation5 [shape = 'u8[16384]{0}', space=vmem, size = 0x4000, scoped, tag = 'input window, operand 1']
    #allocation6 [shape = 's32[2]{0}', space=sflag, size = 0x8, scoped, tag = 'scoped memory for tpu_custom_call.1']
    #allocation7 [shape = 'u8[1024]{0}', space=vmem, size = 0x400, scoped, tag = 'input window, operand 2']
    #allocation8 [shape = 'u8[32768]{0}', space=vmem, size = 0x8000, scoped, tag = 'output window, operand 0']
    %8 = vsyncpa [#allocation3], 0
    %s9 = scalar_lea.sflag [#allocation3], 1
    %10 = vsyncpa %s9, 0
    %11 = vsyncpa [#allocation6], 0
    %s12 = scalar_lea.sflag [#allocation6], 1
    %13 = vsyncpa %s12, 0
    %14 = vsyncpa [#allocation4], 0
    %s15 = scalar_lea.sflag [#allocation4], 1
    %16 = vsyncpa %s15, 0
    loop: start=0, step=1, limit=6
    $region2: #{tpu_custom_call.1} parent=1 // loop_pre_header
      _
    $region3: #{tpu_custom_call.1} parent=1 // loop_header
      %s18 = sphi 0, %s22
      %p19 = scmp.ge.s32.totalorder %s18, 6
      %s25 = sphi 0, %s37
      %s26 = sphi 0, %s33
      %s27 = sphi 0, %s25
      %s28 = sphi 0, %s26
      %s29 = sphi 0, %s27
      %s30 = sphi 0, %s28
      %s42 = sphi 0, %s44
      %s45 = sphi 0, %s42
      %s46 = sphi 0, %s45
      %s62 = sphi 0, %s46
      %s68 = sphi 0, %s70
      %s71 = sphi 0, %s68
      %s72 = sphi 0, %s71
      %s88 = sphi 0, %s72
      %s94 = sphi 0, %s96
      %s97 = sphi 0, %s94
      %s98 = sphi 0, %s97
      %s114 = sphi 0, %s98
      %s122 = sphi 0, %s124
      %s125 = sphi 0, %s122
      %s126 = sphi 0, %s125
      %s142 = sphi 0, %s126
    $region4: #{tpu_custom_call.1} parent=1 // loop_header_branch
      %21 = sbr.rel (%p19) target = $region8
    $region5: #{tpu_custom_call.1} parent=1 // loop_body
      %s23 = ssub.s32 %s18, 1
      %s24 = ssub.s32 %s18, 2
      %s31 = sadd.s32 1, %s26
      %p32 = scmp.ge.s32.totalorder %s31, 1
      %s33 = scalar_select %p32, 0, %s31
      %s34 = sadd.s32 1, %s25
      %s35 = scalar_select %p32, %s34, %s25
      %p36 = scmp.ge.s32.totalorder %s35, 4
      %s37 = scalar_select %p36, 0, %s35
      %s38 = ssub.s32 %s25, %s37
      %s39 = ssub.s32 %s26, %s33
      %s40 = sor.u32 %s38, %s39
      %p41 = scmp.eq.s32.totalorder %s40, 0
      %s43 = sadd.s32 %s42, 1
      %s44 = scalar_select %p41, %s42, %s43
      %p47 = pneg %p41
      %p48 = scmp.eq.s32.totalorder %s18, 3
      %p49 = por %p47, %p48
      %p50 = scmp.ne.s32.totalorder %s42, %s45
      %p51 = scmp.eq.s32.totalorder %s18, 0
      %p52 = por %p50, %p51
      %p53 = scmp.ne.s32.totalorder %s42, %s45
      %p54 = scmp.eq.s32.totalorder %s23, 3
      %p55 = por %p53, %p54
      %p56 = scmp.ne.s32.totalorder %s45, %s46
      %p57 = scmp.eq.s32.totalorder %s23, 0
      %p58 = por %p56, %p57
      %p59 = scmp.ne.s32.totalorder %s45, %s46
      %p60 = scmp.eq.s32.totalorder %s24, 3
      %p61 = por %p59, %p60
      %p63 = scmp.ne.s32.totalorder %s46, %s62
      %p64 = scmp.eq.s32.totalorder %s24, 0
      %p65 = por %p63, %p64
      %s66 = ssub.s32 %s25, %s37
      %p67 = scmp.eq.s32.totalorder %s66, 0
      %s69 = sadd.s32 %s68, 1
      %s70 = scalar_select %p67, %s68, %s69
      %p73 = pneg %p67
      %p74 = scmp.eq.s32.totalorder %s18, 3
      %p75 = por %p73, %p74
      %p76 = scmp.ne.s32.totalorder %s68, %s71
      %p77 = scmp.eq.s32.totalorder %s18, 0
      %p78 = por %p76, %p77
      %p79 = scmp.ne.s32.totalorder %s68, %s71
      %p80 = scmp.eq.s32.totalorder %s23, 3
      %p81 = por %p79, %p80
      %p82 = scmp.ne.s32.totalorder %s71, %s72
      %p83 = scmp.eq.s32.totalorder %s23, 0
      %p84 = por %p82, %p83
      %p85 = scmp.ne.s32.totalorder %s71, %s72
      %p86 = scmp.eq.s32.totalorder %s24, 3
      %p87 = por %p85, %p86
      %p89 = scmp.ne.s32.totalorder %s72, %s88
      %p90 = scmp.eq.s32.totalorder %s24, 0
      %p91 = por %p89, %p90
      %s92 = ssub.s32 %s25, %s37
      %p93 = scmp.eq.s32.totalorder %s92, 0
      %s95 = sadd.s32 %s94, 1
      %s96 = scalar_select %p93, %s94, %s95
      %p99 = pneg %p93
      %p100 = scmp.eq.s32.totalorder %s18, 3
      %p101 = por %p99, %p100
      %p102 = scmp.ne.s32.totalorder %s94, %s97
      %p103 = scmp.eq.s32.totalorder %s18, 0
      %p104 = por %p102, %p103
      %p105 = scmp.ne.s32.totalorder %s94, %s97
      %p106 = scmp.eq.s32.totalorder %s23, 3
      %p107 = por %p105, %p106
      %p108 = scmp.ne.s32.totalorder %s97, %s98
      %p109 = scmp.eq.s32.totalorder %s23, 0
      %p110 = por %p108, %p109
      %p111 = scmp.ne.s32.totalorder %s97, %s98
      %p112 = scmp.eq.s32.totalorder %s24, 3
      %p113 = por %p111, %p112
      %p115 = scmp.ne.s32.totalorder %s98, %s114
      %p116 = scmp.eq.s32.totalorder %s24, 0
      %p117 = por %p115, %p116
      %s118 = ssub.s32 %s25, %s37
      %s119 = ssub.s32 %s26, %s33
      %s120 = sor.u32 %s118, %s119
      %p121 = scmp.eq.s32.totalorder %s120, 0
      %s123 = sadd.s32 %s122, 1
      %s124 = scalar_select %p121, %s122, %s123
      %p127 = pneg %p121
      %p128 = scmp.eq.s32.totalorder %s18, 3
      %p129 = por %p127, %p128
      %p130 = scmp.ne.s32.totalorder %s122, %s125
      %p131 = scmp.eq.s32.totalorder %s18, 0
      %p132 = por %p130, %p131
      %p133 = scmp.ne.s32.totalorder %s122, %s125
      %p134 = scmp.eq.s32.totalorder %s23, 3
      %p135 = por %p133, %p134
      %p136 = scmp.ne.s32.totalorder %s125, %s126
      %p137 = scmp.eq.s32.totalorder %s23, 0
      %p138 = por %p136, %p137
      %p139 = scmp.ne.s32.totalorder %s125, %s126
      %p140 = scmp.eq.s32.totalorder %s24, 3
      %p141 = por %p139, %p140
      %p143 = scmp.ne.s32.totalorder %s126, %s142
      %p144 = scmp.eq.s32.totalorder %s24, 0
      %p145 = por %p143, %p144
      %p146 = scmp.le.s32.totalorder 1, %s18
      %p147 = scmp.lt.s32.totalorder %s18, 5
      %p148 = pnand %p146, %p147
      %p149 = pneg %p148
      // Predicated region
      $region9: #{tpu_custom_call.1} parent=5 // pred_check
        _
      $region10: #{tpu_custom_call.1} parent=5 // pred_check_branch
        %151 = sbr.rel (%p148) target = $region12
      $region11: #{tpu_custom_call.1} parent=5 // pred_region
        %s152 = ssub.s32 %s18, 1
      $region12: #{tpu_custom_call.1} parent=5 // pred_fallthru
        _
      %p153 = scmp.lt.s32.totalorder %s18, 4
      // Predicated region
      $region13: #{tpu_custom_call.1} parent=5 // pred_check
        %p154 = pneg %p153
      $region14: #{tpu_custom_call.1} parent=5 // pred_check_branch
        %156 = sbr.rel (%p154) target = $region16
      $region15: #{tpu_custom_call.1} parent=5 // pred_region
        // Predicated region
        $region17: #{tpu_custom_call.1} parent=15 // pred_check
          %p157 = pneg %p52
        $region18: #{tpu_custom_call.1} parent=15 // pred_check_branch
          %159 = sbr.rel (%p157) target = $region20
        $region19: #{tpu_custom_call.1} parent=15 // pred_region
          #allocation10 [shape = 'u32[6]{0}', space=smem, size = 0x18, scoped, tag = 'DMA stride descriptor']
          %s160 = sand.u32 %s42, 1
          %s161 = scalar_lea.sflag [#allocation3], %s160
          %s162 = sand.u32 %s42, 1
          %s163 = smul.addr %s162, 32
          %s164 = scalar_lea.vmem [#allocation2], %s163
          %s165 = smul.u32 2, %s26
          %s167 = ssub.s32 512, 512
          %168 = vsyncadd %s161, %s167
          %s169 = smul.addr %s25, 2
          %s170 = sadd.s32 %s165, %s169
          %s171 = smul.addr %s170, 128
          %s172 = scalar_lea.hbm %s0, %s171
          %s174 = sshll.u32 1, 14
          %s175 = sxor.u32 4294967295, %s174
          %s177 = sld [smem:[#allocation0]]
          %s178 = sadd.s32 2, %s177
          %s180 = sshll.u32 7, 26
          %s181 = sxor.u32 4294967295, %s180
          %s182 = sand.u32 0, %s181
          %s183 = sshll.u32 %s178, 26
          %s184 = sor.u32 %s182, %s183
          %s185 = sshll.u32 %s164, 4
          %s186 = int_to_ptr.vmem [resolvable:$true] %s185
          %192 = sst [smem:[#allocation10]] 1024
          %s193 = scalar_lea.smem [#allocation10], 1
          %194 = sst [smem:[%s193]] 256
          %s195 = scalar_lea.smem [#allocation10], 2
          %196 = sst [smem:[%s195]] 2
          %s197 = scalar_lea.smem [#allocation10], 3
          %198 = sst [smem:[%s197]] 128
          %s199 = scalar_lea.smem [#allocation10], 4
          %200 = sst [smem:[%s199]] 128
          %s201 = scalar_lea.smem [#allocation10], 5
          %202 = sst [smem:[%s201]] 8
          %204 = dma.general %s172, 512, %s186, %s161, 131072, [#allocation10], %s184, 0
        $region20: #{tpu_custom_call.1} parent=15 // pred_fallthru
          _
        // Predicated region
        $region21: #{tpu_custom_call.1} parent=15 // pred_check
          %p205 = pneg %p78
        $region22: #{tpu_custom_call.1} parent=15 // pred_check_branch
          %207 = sbr.rel (%p205) target = $region24
        $region23: #{tpu_custom_call.1} parent=15 // pred_region
          %s208 = sand.u32 %s18, 1
          %s209 = scalar_lea.sflag [#allocation6], %s208
          %s210 = sand.u32 %s68, 1
          %s211 = smul.addr %s210, 16
          %s212 = scalar_lea.vmem [#allocation5], %s211
          %s214 = ssub.s32 256, 256
          %215 = vsyncadd %s209, %s214
          %s216 = smul.addr %s25, 2
          %s217 = smul.addr %s216, 128
          %s218 = scalar_lea.hbm %s1, %s217
          %s219 = sshll.u32 %s212, 4
          %s220 = int_to_ptr.vmem [resolvable:$true] %s219
          %225 = dma.hbm_to_vmem [thread:$0]  %s218, 256, %s220, %s209, 128, 128, 8
        $region24: #{tpu_custom_call.1} parent=15 // pred_fallthru
          _
        // Predicated region
        $region25: #{tpu_custom_call.1} parent=15 // pred_check
          %p226 = pneg %p104
        $region26: #{tpu_custom_call.1} parent=15 // pred_check_branch
          %228 = sbr.rel (%p226) target = $region28
        $region27: #{tpu_custom_call.1} parent=15 // pred_region
          %s229 = sand.u32 %s18, 1
          %s230 = scalar_lea.sflag [#allocation6], %s229
          %s231 = sand.u32 %s94, 1
          %s232 = scalar_lea.vmem [#allocation7], %s231
          %s234 = ssub.s32 16, 16
          %235 = vsyncadd %s230, %s234
          %s236 = smul.addr %s25, 16
          %s237 = scalar_lea.hbm %s2, %s236
          %s239 = sshll.u32 %s232, 4
          %s240 = int_to_ptr.vmem [resolvable:$true] %s239
          %242 = dma.hbm_to_vmem [thread:$0]  %s237, 16, %s240, %s230
        $region28: #{tpu_custom_call.1} parent=15 // pred_fallthru
          _
      $region16: #{tpu_custom_call.1} parent=5 // pred_fallthru
        _
      %p243 = scmp.le.s32.totalorder 1, %s18
      %p244 = scmp.lt.s32.totalorder %s18, 5
      %p245 = pnand %p243, %p244
      %p246 = pneg %p245
      // Predicated region
      $region29: #{tpu_custom_call.1} parent=5 // pred_check
        _
      $region30: #{tpu_custom_call.1} parent=5 // pred_check_branch
        %248 = sbr.rel (%p245) target = $region32
      $region31: #{tpu_custom_call.1} parent=5 // pred_region
        %s249 = ssub.s32 %s18, 1
        %s250 = sand.u32 %s45, 1
        %s251 = scalar_lea.sflag [#allocation3], %s250
        %s252 = sand.u32 %s45, 1
        %s253 = smul.addr %s252, 32
        %s254 = scalar_lea.vmem [#allocation2], %s253
        // Predicated region
        $region33: #{tpu_custom_call.1} parent=31 // pred_check
          %p255 = pneg %p58
        $region34: #{tpu_custom_call.1} parent=31 // pred_check_branch
          %257 = sbr.rel (%p255) target = $region36
        $region35: #{tpu_custom_call.1} parent=31 // pred_region
          %258 = dma.done %s251, 512
        $region36: #{tpu_custom_call.1} parent=31 // pred_fallthru
          _
        %s259 = sand.u32 %s23, 1
        %s260 = scalar_lea.sflag [#allocation6], %s259
        %s261 = sand.u32 %s71, 1
        %s262 = smul.addr %s261, 16
        %s263 = scalar_lea.vmem [#allocation5], %s262
        // Predicated region
        $region37: #{tpu_custom_call.1} parent=31 // pred_check
          %p264 = pneg %p84
        $region38: #{tpu_custom_call.1} parent=31 // pred_check_branch
          %266 = sbr.rel (%p264) target = $region40
        $region39: #{tpu_custom_call.1} parent=31 // pred_region
          %267 = dma.done %s260, 256
        $region40: #{tpu_custom_call.1} parent=31 // pred_fallthru
          _
        %s268 = sand.u32 %s23, 1
        %s269 = scalar_lea.sflag [#allocation6], %s268
        %s270 = sand.u32 %s97, 1
        %s271 = scalar_lea.vmem [#allocation7], %s270
        // Predicated region
        $region41: #{tpu_custom_call.1} parent=31 // pred_check
          %p272 = pneg %p110
        $region42: #{tpu_custom_call.1} parent=31 // pred_check_branch
          %274 = sbr.rel (%p272) target = $region44
        $region43: #{tpu_custom_call.1} parent=31 // pred_region
          %275 = dma.done %s269, 16
        $region44: #{tpu_custom_call.1} parent=31 // pred_fallthru
          _
        %s276 = sand.u32 %s45, 1
        %s277 = scalar_lea.sflag [#allocation3], %s276
        %s278 = sand.u32 %s45, 1
        %s279 = smul.addr %s278, 32
        %s280 = scalar_lea.vmem [#allocation2], %s279
        %p281 = pneg %p58
        %p282 = pneg %p55
        %s283 = sand.u32 %s23, 1
        %s284 = scalar_lea.sflag [#allocation6], %s283
        %s285 = sand.u32 %s71, 1
        %s286 = smul.addr %s285, 16
        %s287 = scalar_lea.vmem [#allocation5], %s286
        %p288 = pneg %p84
        %p289 = pneg %p81
        %s290 = sand.u32 %s23, 1
        %s291 = scalar_lea.sflag [#allocation6], %s290
        %s292 = sand.u32 %s97, 1
        %s293 = scalar_lea.vmem [#allocation7], %s292
        %p294 = pneg %p110
        %p295 = pneg %p107
        %p296 = pneg %p138
        %p297 = pneg %p135
        %s298 = sand.u32 %s125, 1
        %s299 = scalar_lea.sflag [#allocation4], %s298
        %s300 = sand.u32 %s125, 1
        %s301 = smul.addr %s300, 32
        %s302 = scalar_lea.vmem [#allocation8], %s301
        %s303 = smul.u32 2, %s28
        %s304 = smul.u32 2, %s28
        %v305 = vld [vmem:[%s254] sm:$0xff]
        %v306 = vld [vmem:[%s254 + $0x8] sm:$0xff]
        %v307 = vld [vmem:[%s254 + $0x10] sm:$0xff]
        %v308 = vld [vmem:[%s254 + $0x18] sm:$0xff]
        %v309 = vld [vmem:[%s263] sm:$0xff]
        %v310 = vld [vmem:[%s263 + $0x8] sm:$0xff]
        %v311 = vld [vmem:[%s271] sm:$0x1]
        %v313 = vlaneseq
        %v314 = vshrl.u32 %v313, 7
        %v315 = vsub.s32 0, %v314
        %v316 = vrot.slane %v311, %v315
        %vm318 = vcmask 130048
        %v320 = vsel %vm318, %v305, 0
        %v323 = vsel %vm318, %v306, 0
        %v326 = vsel %vm318, %v307, 0
        %v329 = vsel %vm318, %v308, 0
        %331 = vmatprep.subr.mxu0 0.0
        %332 = vmatpush1.msra.mxu0 0.0
        %333 = vmatprep.subr.mxu0 0.0
        %334 = vmatpush1.msra.mxu0 0.0
        %335 = vmatprep.subr.mxu0 0.0
        %336 = vmatpush1.msra.mxu0 0.0
        %337 = vmatprep.subr.mxu0 0.0
        %338 = vmatpush1.msra.mxu0 0.0
        %339 = vmatprep.subr.mxu0 0.0
        %340 = vmatpush1.msra.mxu0 0.0
        %341 = vmatprep.subr.mxu0 0.0
        %342 = vmatpush1.msra.mxu0 0.0
        %343 = vmatprep.subr.mxu0 0.0
        %344 = vmatpush1.msra.mxu0 0.0
        %345 = vmatprep.subr.mxu0 0.0
        %346 = vmatpush1.msra.mxu0 0.0
        %347 = vmatprep.subr.mxu0 0.0
        %348 = vmatpush1.msra.mxu0 0.0
        %349 = vmatprep.subr.mxu0 0.0
        %350 = vmatpush1.msra.mxu0 0.0
        %351 = vmatprep.subr.mxu0 0.0
        %352 = vmatpush1.msra.mxu0 0.0
        %353 = vmatprep.subr.mxu0 0.0
        %354 = vmatpush1.msra.mxu0 0.0
        %355 = vmatprep.subr.mxu0 0.0
        %356 = vmatpush1.msra.mxu0 0.0
        %357 = vmatprep.subr.mxu0 0.0
        %358 = vmatpush1.msra.mxu0 0.0
        %359 = vmatprep.subr.mxu0 0.0
        %360 = vmatpush1.msra.mxu0 %v310
        %361 = vmatprep.subr.mxu0 0.0
        %362 = vmatpush1.msra.mxu0 %v309
        %363 = vmatprep.subr.mxu0 0.0
        %364 = vmatpush2.msra.mxu0 0.0
        %365 = vmatprep.subr.mxu0 0.0
        %366 = vmatpush2.msra.mxu0 0.0
        %367 = vmatprep.subr.mxu0 0.0
        %368 = vmatpush2.msra.mxu0 0.0
        %369 = vmatprep.subr.mxu0 0.0
        %370 = vmatpush2.msra.mxu0 0.0
        %371 = vmatprep.subr.mxu0 0.0
        %372 = vmatpush2.msra.mxu0 0.0
        %373 = vmatprep.subr.mxu0 0.0
        %374 = vmatpush2.msra.mxu0 0.0
        %375 = vmatprep.subr.mxu0 0.0
        %376 = vmatpush2.msra.mxu0 0.0
        %377 = vmatprep.subr.mxu0 0.0
        %378 = vmatpush2.msra.mxu0 0.0
        %379 = vmatprep.subr.mxu0 0.0
        %380 = vmatpush2.msra.mxu0 0.0
        %381 = vmatprep.subr.mxu0 0.0
        %382 = vmatpush2.msra.mxu0 0.0
        %383 = vmatprep.subr.mxu0 0.0
        %384 = vmatpush2.msra.mxu0 0.0
        %385 = vmatprep.subr.mxu0 0.0
        %386 = vmatpush2.msra.mxu0 0.0
        %387 = vmatprep.subr.mxu0 0.0
        %388 = vmatpush2.msra.mxu0 0.0
        %389 = vmatprep.subr.mxu0 0.0
        %390 = vmatpush2.msra.mxu0 0.0
        %391 = vmatprep.subr.mxu0 0.0
        %392 = vmatpush2.msra.mxu0 0.0
        %393 = vmatprep.subr.mxu0 0.0
        %394 = vmatpush2.msra.mxu0 0.0
        %395 = vmatprep.mubr.f32.mxu0 0.0
        %396 = vmatmul.mubr.f32.gmra.mxu0 %v320
        %v397 = vpop.f32.mrf.mxu0
        %v398 = vadd.f32 %v316, %v397
        %v399 = vpop.f32.mrf.mxu0
        %400 = vmatprep.mubr.f32.mxu0 0.0
        %401 = vmatmul.mubr.f32.gmra.mxu0 %v323
        %v402 = vpop.f32.mrf.mxu0
        %v403 = vadd.f32 %v316, %v402
        %v404 = vpop.f32.mrf.mxu0
        %405 = vmatprep.mubr.f32.mxu0 0.0
        %406 = vmatmul.mubr.f32.gmra.mxu0 %v326
        %v407 = vpop.f32.mrf.mxu0
        %v408 = vadd.f32 %v316, %v407
        %v409 = vpop.f32.mrf.mxu0
        %410 = vmatprep.mubr.f32.mxu0 0.0
        %411 = vmatmul.mubr.f32.gmra.mxu0 %v329
        %v412 = vpop.f32.mrf.mxu0
        %v413 = vadd.f32 %v316, %v412
        %v414 = vpop.f32.mrf.mxu0
        %415 = vdwg.mxu0
        %vm416 = vcmask 261120
        %417 = vst.msk [vmem:[%s302] sm:$0xff] %vm416, %v398
        %418 = vst.msk [vmem:[%s302 + $0x8] sm:$0xff] %vm416, %v403
        %419 = vst.msk [vmem:[%s302 + $0x10] sm:$0xff] %vm416, %v408
        %420 = vst.msk [vmem:[%s302 + $0x18] sm:$0xff] %vm416, %v413
        %s421 = sand.u32 %s125, 1
        %s422 = scalar_lea.sflag [#allocation4], %s421
        %s423 = sand.u32 %s125, 1
        %s424 = smul.addr %s423, 32
        %s425 = scalar_lea.vmem [#allocation8], %s424
        // Predicated region
        $region45: #{tpu_custom_call.1} parent=31 // pred_check
          %p426 = pneg %p135
        $region46: #{tpu_custom_call.1} parent=31 // pred_check_branch
          %428 = sbr.rel (%p426) target = $region48
        $region47: #{tpu_custom_call.1} parent=31 // pred_region
          #allocation12 [shape = 'u32[6]{0}', space=smem, size = 0x18, scoped, tag = 'DMA stride descriptor']
          %s429 = smul.u32 2, %s28
          %s431 = ssub.s32 512, 512
          %432 = vsyncadd %s422, %s431
          %s433 = smul.addr %s27, 2
          %s434 = sadd.s32 %s429, %s433
          %s435 = smul.addr %s434, 128
          %s436 = scalar_lea.hbm %s3, %s435
          %s438 = sshll.u32 1, 14
          %s439 = sxor.u32 4294967295, %s438
          %s442 = sshll.u32 7, 18
          %s443 = sxor.u32 4294967295, %s442
          %s444 = sand.u32 0, %s443
          %s446 = sor.u32 %s444, 0
          %s447 = sshll.u32 %s425, 4
          %s448 = int_to_ptr.vmem [resolvable:$true] %s447
          %454 = sst [smem:[#allocation12]] 256
          %s455 = scalar_lea.smem [#allocation12], 1
          %456 = sst [smem:[%s455]] 1024
          %s457 = scalar_lea.smem [#allocation12], 2
          %458 = sst [smem:[%s457]] 2
          %s459 = scalar_lea.smem [#allocation12], 3
          %460 = sst [smem:[%s459]] 128
          %s461 = scalar_lea.smem [#allocation12], 4
          %462 = sst [smem:[%s461]] 128
          %s463 = scalar_lea.smem [#allocation12], 5
          %464 = sst [smem:[%s463]] 8
          %466 = dma.general %s448, 512, %s436, %s422, 131072, [#allocation12], %s446, 0
        $region48: #{tpu_custom_call.1} parent=31 // pred_fallthru
          _
      $region32: #{tpu_custom_call.1} parent=5 // pred_fallthru
        _
      %p467 = scmp.le.s32.totalorder 2, %s18
      // Predicated region
      $region49: #{tpu_custom_call.1} parent=5 // pred_check
        %p468 = pneg %p467
      $region50: #{tpu_custom_call.1} parent=5 // pred_check_branch
        %470 = sbr.rel (%p468) target = $region52
      $region51: #{tpu_custom_call.1} parent=5 // pred_region
        %s471 = ssub.s32 %s18, 2
        // Predicated region
        $region53: #{tpu_custom_call.1} parent=51 // pred_check
          %p472 = pneg %p141
        $region54: #{tpu_custom_call.1} parent=51 // pred_check_branch
          %474 = sbr.rel (%p472) target = $region56
        $region55: #{tpu_custom_call.1} parent=51 // pred_region
          %s475 = sand.u32 %s126, 1
          %s476 = scalar_lea.sflag [#allocation4], %s475
          %s477 = sand.u32 %s126, 1
          %s478 = smul.addr %s477, 32
          %s479 = scalar_lea.vmem [#allocation8], %s478
          %480 = dma.done %s476, 512
        $region56: #{tpu_custom_call.1} parent=51 // pred_fallthru
          _
      $region52: #{tpu_custom_call.1} parent=5 // pred_fallthru
        _
    $region6: #{tpu_custom_call.1} parent=1 // loop_footer
      %s22 = sadd.s32 1, %s18
    $region7: #{tpu_custom_call.1} parent=1 // loop_footer_branch
      %17 = sbr.rel target = $region3
    $region8: #{tpu_custom_call.1} parent=1 // loop_exit
      _
    %481 = vsyncpa [#allocation3], 1
    %s482 = scalar_lea.sflag [#allocation3], 1
    %483 = vsyncpa %s482, 1
    %484 = vsyncpa [#allocation6], 1
    %s485 = scalar_lea.sflag [#allocation6], 1
    %486 = vsyncpa %s485, 1
    %487 = vsyncpa [#allocation4], 1
    %s488 = scalar_lea.sflag [#allocation4], 1
    %489 = vsyncpa %s488, 1

</llo_original>
